<compile_context>
chip_gen: v7x
topology: tpu7x:2x2x1
jax: 0.10.0
libtpu: 0.0.40
codegen_flags: <defaults>
</compile_context>

<pallas_src>
import functools

import jax
import jax.numpy as jnp
from jax.experimental import pallas as pl
from jax.experimental.pallas import tpu as pltpu

_LANES = 128
_DEFAULT_BLOCK_BYTES = 4 * 1024 * 1024   # ~4 MiB blocks: v5e-safe, amortizes grid overhead.
_MAX_SPATIAL_TILE = 8192                 # bounds the per-tile unrolled slice loop to <= 64.


# ---------------------------------------------------------------------------
# Primary path: one contiguous (1, C_BLK, H*W) block per grid cell.
# ---------------------------------------------------------------------------
def _gap_full_kernel(x_ref, o_ref, *, inv_hw):
    # x_ref: (1, C_BLK, H*W) input block; o_ref: (1, 1, C_BLK) lane-dense output.
    x = x_ref[...].astype(jnp.float32)                 # accumulate in f32
    s = jnp.sum(x, axis=2)                             # (1, C_BLK)
    o_ref[...] = (s * inv_hw)[:, None, :].astype(o_ref.dtype)


# ---------------------------------------------------------------------------
# Fallback path: spatial tiling for very large H*W.
# ---------------------------------------------------------------------------
def _gap_tiled_kernel(x_ref, o_ref, acc_ref, *, hw, ts, inv_hw, need_mask):
    # x_ref: (1, C_BLK, TS); o_ref: (1, 1, C_BLK); acc_ref: (1, C_BLK, 128) f32.
    k = pl.program_id(2)
    nk = pl.num_programs(2)
    n_slices = ts // _LANES

    @pl.when(k == 0)
    def _init():
        acc_ref[...] = jnp.zeros_like(acc_ref)

    def _accumulate(masked):
        # Pure VPU cast+add over 128-lane-aligned static slices; the cross-lane (XLU)
        # reduce is deferred to finalize so it is not on the per-tile critical path.
        base = k * ts
        for j in range(n_slices):
            sl = x_ref[:, :, pl.ds(j * _LANES, _LANES)].astype(jnp.float32)
            if masked:
                pos = base + j * _LANES + jax.lax.broadcasted_iota(jnp.int32, sl.shape, 2)
                sl = jnp.where(pos < hw, sl, 0.0)
            acc_ref[...] += sl

    if need_mask:
        # Only the last spatial tile can be partial -- mask only there.
        @pl.when(k < nk - 1)
        def _full_tiles():
            _accumulate(masked=False)

        @pl.when(k == nk - 1)
        def _last_tile():
            _accumulate(masked=True)
    else:
        _accumulate(masked=False)

    @pl.when(k == nk - 1)
    def _finalize():
        s = jnp.sum(acc_ref[...], axis=2)              # single lane reduce per C block
        o_ref[...] = (s * inv_hw)[:, None, :].astype(o_ref.dtype)


# ---------------------------------------------------------------------------
# Tiling plan
# ---------------------------------------------------------------------------
def _round_down(v, m):
    return (v // m) * m


def _round_up(v, m):
    return ((v + m - 1) // m) * m


def _plan(N, C, hw, itemsize, block_bytes, force_spatial_tile):
    """Returns ("full", c_blk, None, False) or ("tiled", c_blk, ts, need_mask)."""
    if force_spatial_tile is None:
        if C * hw * itemsize <= block_bytes:
            c_blk = C
            if N == 1 and C >= 2 * _LANES:
                # With one batch there is only a single "parallel" grid cell; split C so
                # v7x's second TensorCore also gets work (harmless on 1-TC v5e/v6e).
                c_blk = _round_up(pl.cdiv(C, 2), _LANES)
            return "full", c_blk, None, False
        if C >= _LANES and _LANES * hw * itemsize <= block_bytes:
            # Still one contiguous HBM run of C_BLK full channels per block.
            c_blk = _round_down(block_bytes // (hw * itemsize), _LANES)
            return "full", c_blk, None, False
        ts = None
    else:
        ts = int(force_spatial_tile)
        if ts % _LANES != 0 or not (0 < ts <= hw):
            raise ValueError(
                f"force_spatial_tile must be a positive multiple of {_LANES} no larger "
                f"than H*W={hw}; got {force_spatial_tile}")

    # Spatial-tiling fallback (H*W too large for a full-channel block).
    ts_floor = _round_up(max(_LANES, 512 // itemsize), _LANES)   # >= 512 B per-channel run
    target_ts = ts if ts is not None else max(1024, ts_floor)
    if C < _LANES or C * target_ts * itemsize <= block_bytes:
        c_blk = C
    else:
        # Sub-block C (multiple of 128) so the block stays within budget with a long tile.
        c_blk = max(_LANES, _round_down(block_bytes // (target_ts * itemsize), _LANES))
        c_blk = min(c_blk, C)
    if ts is None:
        ts = _round_down(block_bytes // (c_blk * itemsize), _LANES)
        ts = max(ts_floor, min(ts, _MAX_SPATIAL_TILE, _round_down(hw, _LANES)))
    need_mask = (hw % ts) != 0
    return "tiled", c_blk, ts, need_mask


# ---------------------------------------------------------------------------
# Public wrapper: Pallas equivalent of F.avg_pool2d(x, kernel_size=x.size()[2:])
# ---------------------------------------------------------------------------
def global_avg_pool2d(x, *, block_bytes=_DEFAULT_BLOCK_BYTES, _force_spatial_tile=None):
    """x: (N, C, H, W) -> (N, C, 1, 1), same dtype as x (f32 accumulation inside)."""
    if x.ndim != 4:
        raise ValueError(f"expected NCHW input, got shape {x.shape}")
    N, C, H, W = x.shape
    hw = H * W
    inv_hw = float(1.0 / hw)
    itemsize = jnp.dtype(x.dtype).itemsize
    x_flat = x.reshape(N, C, hw)          # free, contiguous reshape for NCHW

    mode, c_blk, ts, need_mask = _plan(N, C, hw, itemsize, block_bytes, _force_spatial_tile)
    n_c = pl.cdiv(C, c_blk)

    if mode == "full":
        kernel = functools.partial(_gap_full_kernel, inv_hw=inv_hw)
        grid = (N, n_c)
        in_specs = [pl.BlockSpec((1, c_blk, hw), lambda n, c: (n, c, 0))]
        out_specs = pl.BlockSpec((1, 1, c_blk), lambda n, c: (n, 0, c))
        scratch_shapes = []
        dim_sem = ("parallel", "parallel")
    else:
        kernel = functools.partial(
            _gap_tiled_kernel, hw=hw, ts=ts, inv_hw=inv_hw, need_mask=need_mask)
        grid = (N, n_c, pl.cdiv(hw, ts))                 # reduction axis last
        in_specs = [pl.BlockSpec((1, c_blk, ts), lambda n, c, k: (n, c, k))]
        out_specs = pl.BlockSpec((1, 1, c_blk), lambda n, c, k: (n, 0, c))
        scratch_shapes = [pltpu.VMEM((1, c_blk, _LANES), jnp.float32)]
        dim_sem = ("parallel", "parallel", "arbitrary")

    out = pl.pallas_call(
        kernel,
        out_shape=jax.ShapeDtypeStruct((N, 1, C), x.dtype),
        grid_spec=pltpu.PrefetchScalarGridSpec(
            num_scalar_prefetch=0,
            grid=grid,
            in_specs=in_specs,
            out_specs=out_specs,
            scratch_shapes=scratch_shapes,
        ),
        compiler_params=pltpu.CompilerParams(
            dimension_semantics=dim_sem,
            # 32 MiB scoped VMEM: <= physical VMEM on v5e/v6e (128 MiB) and v7x (64 MiB);
            # comfortable headroom for 2x4 MiB double-buffered input + cast temps + scratch.
            vmem_limit_bytes=32 * 1024 * 1024,
        ),
    )(x_flat)

    return out.reshape(N, C, 1, 1)


if __name__ == "__main__":
    # 1) Primary contiguous path, f32, small CNN-like shape.
    x = jax.random.normal(jax.random.PRNGKey(0), (2, 4, 16, 16), dtype=jnp.float32)
    out = jax.block_until_ready(global_avg_pool2d(x))
    ref = jnp.mean(x, axis=(2, 3), keepdims=True)
    assert out.shape == (2, 4, 1, 1), out.shape
    assert jnp.allclose(out, ref, atol=1e-5, rtol=1e-5), float(jnp.max(jnp.abs(out - ref)))

    # 2) Primary path with a C split (N == 1 megacore branch / multi-C-block grid).
    x1 = jax.random.normal(jax.random.PRNGKey(2), (1, 256, 8, 8), dtype=jnp.float32)
    out1 = jax.block_until_ready(global_avg_pool2d(x1))
    ref1 = jnp.mean(x1, axis=(2, 3), keepdims=True)
    assert out1.shape == (1, 256, 1, 1), out1.shape
    assert jnp.allclose(out1, ref1, atol=1e-5, rtol=1e-5)

    # 3) Spatial-tiling fallback (forced): bf16 input, f32 accumulation, remainder mask
    #    on the last tile only (H*W = 300, tile = 128 -> tiles of 128/128/44).
    x2 = jax.random.normal(jax.random.PRNGKey(1), (2, 8, 15, 20), dtype=jnp.bfloat16)
    out2 = jax.block_until_ready(global_avg_pool2d(x2, _force_spatial_tile=128))
    ref2 = jnp.mean(x2.astype(jnp.float32), axis=(2, 3), keepdims=True)
    assert out2.shape == (2, 8, 1, 1), out2.shape
    assert jnp.allclose(out2.astype(jnp.float32), ref2, atol=1e-2, rtol=1e-2)

    print("KERNEL_OK")
</pallas_src>

<mosaic_0001>
module attributes {stable_mosaic.version = 11 : i64} {
  func.func @_gap_full_kernel(%arg0: i32, %arg1: i32, %arg2: memref<1x4x256xf32, #tpu.memory_space<vmem>>, %arg3: memref<1x1x4xf32, #tpu.memory_space<vmem>>) attributes {dimension_semantics = [#tpu.dimension_semantics<parallel>, #tpu.dimension_semantics<parallel>], iteration_bounds = array<i64: 2, 1>, scalar_prefetch = 0 : i64, scratch_operands = 0 : i64, tpu.core_type = #tpu.core_type<tc>, window_params = [{transform_indices = @transform_0, window_bounds = array<i64: 1, 4, 256>}, {transform_indices = @transform_1, window_bounds = array<i64: 1, 1, 4>}]} {
    %c0 = arith.constant 0 : index
    %c0_0 = arith.constant 0 : index
    %c0_1 = arith.constant 0 : index
    %0 = vector.load %arg2[%c0, %c0_0, %c0_1] : memref<1x4x256xf32, #tpu.memory_space<vmem>>, vector<1x4x256xf32>
    %cst = arith.constant dense<0.000000e+00> : vector<1x4xf32>
    %1 = vector.multi_reduction <add>, %0, %cst [2] : vector<1x4x256xf32> to vector<1x4xf32>
    %cst_2 = arith.constant 3.906250e-03 : f32
    %2 = vector.broadcast %cst_2 : f32 to vector<1x4xf32>
    %3 = arith.mulf %1, %2 : vector<1x4xf32>
    %4 = vector.shape_cast %3 : vector<1x4xf32> to vector<1x1x4xf32>
    %c0_3 = arith.constant 0 : index
    %c0_4 = arith.constant 0 : index
    %c0_5 = arith.constant 0 : index
    %5 = vector.load %arg3[%c0_3, %c0_4, %c0_5] : memref<1x1x4xf32, #tpu.memory_space<vmem>>, vector<1x1x4xf32>
    tpu.vector_store %arg3[%c0_3, %c0_4, %c0_5], %4 {strides = array<i32>} : memref<1x1x4xf32, #tpu.memory_space<vmem>>, vector<1x1x4xf32>,
    return
  }
  func.func @transform_0(%arg0: i32, %arg1: i32) -> (i32, i32, i32) {
    %c0_i32 = arith.constant 0 : i32
    %c0_i32_0 = arith.constant 0 : i32
    return %arg0, %arg1, %c0_i32 : i32, i32, i32
  }
  func.func @transform_1(%arg0: i32, %arg1: i32) -> (i32, i32, i32) {
    %c0_i32 = arith.constant 0 : i32
    %c0_i32_0 = arith.constant 0 : i32
    return %arg0, %c0_i32, %arg1 : i32, i32, i32
  }
}

</mosaic_0001>

<llo_original>
// kernel: tpu_custom_call.1
$region0: #{tpu_custom_call.1}
  #allocation0 [shape = 'u32[]', space=smem, size = 0x4, offset = 0x4, fixed_abs, tag = 'smem constant byte address 0x4 - core index']
  #allocation1 [shape = 'u32[144,128]{1,0:T(1,128)}', space=vmem, size = 0x12000, scoped, tag = 'internal scratch']
  %s0 = inlined_call_operand.hbm [shape: f32[2,4,256], index: 0, kind: input, shape index: {}]
  %s1 = inlined_call_operand.hbm [shape: f32[2,1,4], index: 1, kind: output, shape index: {}]
  %s2 = sld [smem:[#allocation0]]
  $region41: #{tpu_custom_call.1} parent=0
    _
  %s4 = ssub.s32 1, %s2
  %s5 = scalar_select 0, %s4, %s2
  $region1: #{tpu_custom_call.1} parent=0
    #allocation2 [shape = 'u8[8192]{0}', space=vmem, size = 0x2000, scoped, tag = 'input window, operand 0']
    #allocation3 [shape = 's32[2]{0}', space=sflag, size = 0x8, scoped, tag = 'scoped memory for tpu_custom_call.1']
    #allocation4 [shape = 's32[2]{0}', space=sflag, size = 0x8, scoped, tag = 'scoped memory for tpu_custom_call.1']
    #allocation5 [shape = 'u8[1024]{0}', space=vmem, size = 0x400, scoped, tag = 'output window, operand 0']
    %6 = vsyncpa [#allocation3], 0
    %s7 = scalar_lea.sflag [#allocation3], 1
    %8 = vsyncpa %s7, 0
    %9 = vsyncpa [#allocation4], 0
    %s10 = scalar_lea.sflag [#allocation4], 1
    %11 = vsyncpa %s10, 0
    loop: start=0, step=1, limit=4
    $region2: #{tpu_custom_call.1} parent=1 // loop_pre_header
      _
    $region3: #{tpu_custom_call.1} parent=1 // loop_header
      %s13 = sphi 0, %s17
      %p14 = scmp.ge.s32.totalorder %s13, 4
      %s20 = sphi 0, %s32
      %s21 = sphi 0, %s28
      %s22 = sphi 0, %s20
      %s23 = sphi 0, %s21
      %s24 = sphi 0, %s22
      %s25 = sphi 0, %s23
      %s37 = sphi 0, %s39
      %s40 = sphi 0, %s37
      %s41 = sphi 0, %s40
      %s57 = sphi 0, %s41
      %s65 = sphi 0, %s67
      %s68 = sphi 0, %s65
      %s69 = sphi 0, %s68
      %s85 = sphi 0, %s69
    $region4: #{tpu_custom_call.1} parent=1 // loop_header_branch
      %16 = sbr.rel (%p14) target = $region8
    $region5: #{tpu_custom_call.1} parent=1 // loop_body
      %s18 = ssub.s32 %s13, 1
      %s19 = ssub.s32 %s13, 2
      %s26 = sadd.s32 1, %s21
      %p27 = scmp.ge.s32.totalorder %s26, 1
      %s28 = scalar_select %p27, 0, %s26
      %s29 = sadd.s32 1, %s20
      %s30 = scalar_select %p27, %s29, %s20
      %p31 = scmp.ge.s32.totalorder %s30, 2
      %s32 = scalar_select %p31, 0, %s30
      %s33 = ssub.s32 %s20, %s32
      %s34 = ssub.s32 %s21, %s28
      %s35 = sor.u32 %s33, %s34
      %p36 = scmp.eq.s32.totalorder %s35, 0
      %s38 = sadd.s32 %s37, 1
      %s39 = scalar_select %p36, %s37, %s38
      %p42 = pneg %p36
      %p43 = scmp.eq.s32.totalorder %s13, 1
      %p44 = por %p42, %p43
      %p45 = scmp.ne.s32.totalorder %s37, %s40
      %p46 = scmp.eq.s32.totalorder %s13, 0
      %p47 = por %p45, %p46
      %p48 = scmp.ne.s32.totalorder %s37, %s40
      %p49 = scmp.eq.s32.totalorder %s18, 1
      %p50 = por %p48, %p49
      %p51 = scmp.ne.s32.totalorder %s40, %s41
      %p52 = scmp.eq.s32.totalorder %s18, 0
      %p53 = por %p51, %p52
      %p54 = scmp.ne.s32.totalorder %s40, %s41
      %p55 = scmp.eq.s32.totalorder %s19, 1
      %p56 = por %p54, %p55
      %p58 = scmp.ne.s32.totalorder %s41, %s57
      %p59 = scmp.eq.s32.totalorder %s19, 0
      %p60 = por %p58, %p59
      %s61 = ssub.s32 %s20, %s32
      %s62 = ssub.s32 %s21, %s28
      %s63 = sor.u32 %s61, %s62
      %p64 = scmp.eq.s32.totalorder %s63, 0
      %s66 = sadd.s32 %s65, 1
      %s67 = scalar_select %p64, %s65, %s66
      %p70 = pneg %p64
      %p71 = scmp.eq.s32.totalorder %s13, 1
      %p72 = por %p70, %p71
      %p73 = scmp.ne.s32.totalorder %s65, %s68
      %p74 = scmp.eq.s32.totalorder %s13, 0
      %p75 = por %p73, %p74
      %p76 = scmp.ne.s32.totalorder %s65, %s68
      %p77 = scmp.eq.s32.totalorder %s18, 1
      %p78 = por %p76, %p77
      %p79 = scmp.ne.s32.totalorder %s68, %s69
      %p80 = scmp.eq.s32.totalorder %s18, 0
      %p81 = por %p79, %p80
      %p82 = scmp.ne.s32.totalorder %s68, %s69
      %p83 = scmp.eq.s32.totalorder %s19, 1
      %p84 = por %p82, %p83
      %p86 = scmp.ne.s32.totalorder %s69, %s85
      %p87 = scmp.eq.s32.totalorder %s19, 0
      %p88 = por %p86, %p87
      %p89 = scmp.le.s32.totalorder 1, %s13
      %p90 = scmp.lt.s32.totalorder %s13, 3
      %p91 = pnand %p89, %p90
      %p92 = pneg %p91
      // Predicated region
      $region9: #{tpu_custom_call.1} parent=5 // pred_check
        _
      $region10: #{tpu_custom_call.1} parent=5 // pred_check_branch
        %94 = sbr.rel (%p91) target = $region12
      $region11: #{tpu_custom_call.1} parent=5 // pred_region
        %s95 = ssub.s32 %s13, 1
      $region12: #{tpu_custom_call.1} parent=5 // pred_fallthru
        _
      %p96 = scmp.lt.s32.totalorder %s13, 2
      // Predicated region
      $region13: #{tpu_custom_call.1} parent=5 // pred_check
        %p97 = pneg %p96
      $region14: #{tpu_custom_call.1} parent=5 // pred_check_branch
        %99 = sbr.rel (%p97) target = $region16
      $region15: #{tpu_custom_call.1} parent=5 // pred_region
        // Predicated region
        $region17: #{tpu_custom_call.1} parent=15 // pred_check
          %p100 = pneg %p47
        $region18: #{tpu_custom_call.1} parent=15 // pred_check_branch
          %102 = sbr.rel (%p100) target = $region20
        $region19: #{tpu_custom_call.1} parent=15 // pred_region
          %s103 = sand.u32 %s37, 1
          %s104 = scalar_lea.sflag [#allocation3], %s103
          %s105 = sand.u32 %s37, 1
          %s106 = smul.addr %s105, 8
          %s107 = scalar_lea.vmem [#allocation2], %s106
          %s109 = ssub.s32 128, 128
          %110 = vsyncadd %s104, %s109
          %s111 = smul.addr %s21, 2
          %s112 = smul.addr %s20, 2
          %s113 = sadd.s32 %s111, %s112
          %s114 = smul.addr %s113, 64
          %s115 = scalar_lea.hbm %s0, %s114
          %s117 = sshll.u32 %s107, 4
          %s118 = int_to_ptr.vmem [resolvable:$true] %s117
          %120 = dma.hbm_to_vmem [thread:$0]  %s115, 128, %s118, %s104
        $region20: #{tpu_custom_call.1} parent=15 // pred_fallthru
          _
      $region16: #{tpu_custom_call.1} parent=5 // pred_fallthru
        _
      %p121 = scmp.le.s32.totalorder 1, %s13
      %p122 = scmp.lt.s32.totalorder %s13, 3
      %p123 = pnand %p121, %p122
      %p124 = pneg %p123
      // Predicated region
      $region21: #{tpu_custom_call.1} parent=5 // pred_check
        _
      $region22: #{tpu_custom_call.1} parent=5 // pred_check_branch
        %126 = sbr.rel (%p123) target = $region24
      $region23: #{tpu_custom_call.1} parent=5 // pred_region
        %s127 = ssub.s32 %s13, 1
        %s128 = sand.u32 %s40, 1
        %s129 = scalar_lea.sflag [#allocation3], %s128
        %s130 = sand.u32 %s40, 1
        %s131 = smul.addr %s130, 8
        %s132 = scalar_lea.vmem [#allocation2], %s131
        // Predicated region
        $region25: #{tpu_custom_call.1} parent=23 // pred_check
          %p133 = pneg %p53
        $region26: #{tpu_custom_call.1} parent=23 // pred_check_branch
          %135 = sbr.rel (%p133) target = $region28
        $region27: #{tpu_custom_call.1} parent=23 // pred_region
          %136 = dma.done %s129, 128
        $region28: #{tpu_custom_call.1} parent=23 // pred_fallthru
          _
        %s137 = sand.u32 %s40, 1
        %s138 = scalar_lea.sflag [#allocation3], %s137
        %s139 = sand.u32 %s40, 1
        %s140 = smul.addr %s139, 8
        %s141 = scalar_lea.vmem [#allocation2], %s140
        %p142 = pneg %p53
        %p143 = pneg %p50
        %p144 = pneg %p81
        %p145 = pneg %p78
        %s146 = sand.u32 %s68, 1
        %s147 = scalar_lea.sflag [#allocation4], %s146
        %s148 = sand.u32 %s68, 1
        %s149 = scalar_lea.vmem [#allocation5], %s148
        %v150 = vld [vmem:[%s132] sm:$0xff]
        %v152 = vcombine.high %v150, %v150
        %vm154 = vcmask 1043456
        %v155 = vsel %vm154, %v150, 0.0
        %v156 = vsel %vm154, %v152, 0.0
        %v157 = vadd.f32 %v155, %v156
        %158 = vadd.xlane.f32.xlu0 %v157
        %v159 = vpop.xlane.xlu0 %158
        %v160 = vmul.f32 %v159, 0.00390625
        %v162 = vlaneseq
        %v163 = vand.u32 %v162, 127
        %v164 = vlaneseq
        %v165 = vshrl.u32 %v164, 7
        %v166 = vsub.s32 %v163, %v165
        %v167 = vrot.slane %v160, %v166
        %vm169 = vcmask 24576
        %170 = vst.msk [vmem:[%s149] sm:$0x1] %vm169, %v167
        %s171 = sand.u32 %s68, 1
        %s172 = scalar_lea.sflag [#allocation4], %s171
        %s173 = sand.u32 %s68, 1
        %s174 = scalar_lea.vmem [#allocation5], %s173
        // Predicated region
        $region29: #{tpu_custom_call.1} parent=23 // pred_check
          %p175 = pneg %p78
        $region30: #{tpu_custom_call.1} parent=23 // pred_check_branch
          %177 = sbr.rel (%p175) target = $region32
        $region31: #{tpu_custom_call.1} parent=23 // pred_region
          %s179 = ssub.s32 16, 16
          %180 = vsyncadd %s172, %s179
          %s181 = sadd.s32 %s23, %s22
          %s182 = smul.addr %s181, 16
          %s183 = scalar_lea.hbm %s1, %s182
          %s185 = sshll.u32 %s174, 4
          %s186 = int_to_ptr.vmem [resolvable:$true] %s185
          %188 = dma.vmem_to_hbm [thread:$0]  %s186, 16, %s183, %s172
        $region32: #{tpu_custom_call.1} parent=23 // pred_fallthru
          _
      $region24: #{tpu_custom_call.1} parent=5 // pred_fallthru
        _
      %p189 = scmp.le.s32.totalorder 2, %s13
      // Predicated region
      $region33: #{tpu_custom_call.1} parent=5 // pred_check
        %p190 = pneg %p189
      $region34: #{tpu_custom_call.1} parent=5 // pred_check_branch
        %192 = sbr.rel (%p190) target = $region36
      $region35: #{tpu_custom_call.1} parent=5 // pred_region
        %s193 = ssub.s32 %s13, 2
        // Predicated region
        $region37: #{tpu_custom_call.1} parent=35 // pred_check
          %p194 = pneg %p84
        $region38: #{tpu_custom_call.1} parent=35 // pred_check_branch
          %196 = sbr.rel (%p194) target = $region40
        $region39: #{tpu_custom_call.1} parent=35 // pred_region
          %s197 = sand.u32 %s69, 1
          %s198 = scalar_lea.sflag [#allocation4], %s197
          %s199 = sand.u32 %s69, 1
          %s200 = scalar_lea.vmem [#allocation5], %s199
          %201 = dma.done %s198, 16
        $region40: #{tpu_custom_call.1} parent=35 // pred_fallthru
          _
      $region36: #{tpu_custom_call.1} parent=5 // pred_fallthru
        _
    $region6: #{tpu_custom_call.1} parent=1 // loop_footer
      %s17 = sadd.s32 1, %s13
    $region7: #{tpu_custom_call.1} parent=1 // loop_footer_branch
      %12 = sbr.rel target = $region3
    $region8: #{tpu_custom_call.1} parent=1 // loop_exit
      _
    %202 = vsyncpa [#allocation3], 1
    %s203 = scalar_lea.sflag [#allocation3], 1
    %204 = vsyncpa %s203, 1
    %205 = vsyncpa [#allocation4], 1
    %s206 = scalar_lea.sflag [#allocation4], 1
    %207 = vsyncpa %s206, 1

</llo_original>
